<compile_context>
chip_gen: v7x
topology: tpu7x:2x2x1
jax: 0.10.0
libtpu: 0.0.40
codegen_flags: <defaults>
</compile_context>

<pallas_src>
import jax
import jax.numpy as jnp
import numpy as np
from jax.experimental import pallas as pl
from jax.experimental.pallas import tpu as pltpu


def _resnext_fused_kernel(x_ref, w1t_ref, b1_ref, w2t_ref, b2_ref, o_ref):
    """One (C, tile_hw) channels-first pixel slab of one image.

    x_ref   : (C, T)       input slab (activation dtype)
    w1t_ref : (G*Cm, C)    fused 1x1 conv #1 weights (transposed, all branches)
    b1_ref  : (G*Cm, 1)    fused 1x1 conv #1 biases (f32)
    w2t_ref : (C, G*Cm)    fused 1x1 conv #2 weights (transposed)
    b2_ref  : (C, 1)       branch-summed 1x1 conv #2 biases (f32)
    o_ref   : (C, T)       output slab
    """
    x = x_ref[...]
    # Wide matmul #1: (G*Cm, C) @ (C, T) -> (G*Cm, T), f32 accumulation on MXU.
    h = jnp.dot(w1t_ref[...], x, preferred_element_type=jnp.float32)
    h = jnp.maximum(h + b1_ref[...], 0.0)                  # bias + ReLU, once
    # Feed matmul #2 in the activation dtype (bf16 in -> native bf16 MXU operands).
    h = h.astype(x.dtype)
    # Wide matmul #2: (C, G*Cm) @ (G*Cm, T) -> (C, T).
    y = jnp.dot(w2t_ref[...], h, preferred_element_type=jnp.float32)
    y = y + b2_ref[...] + x.astype(jnp.float32)            # summed bias + residual
    o_ref[...] = y.astype(o_ref.dtype)


def _vmem_capacity_bytes():
    try:
        return int(pltpu.get_tpu_info().vmem_capacity_bytes)
    except Exception:
        return 64 << 20     # conservative fallback (v7x per-TC physical VMEM)


def resnext_block(x_nchw, w1, b1, w2, b2, *, tile_hw=None):
    """y = x + sum_g (relu(x *1x1 w1[g] + b1[g]) *1x1 w2[g] + b2[g]).

    x_nchw : (N, C, H, W)   PyTorch NCHW layout (only reshaped, never transposed)
    w1     : (G, C, Cm)     b1 : (G, Cm)
    w2     : (G, Cm, C)     b2 : (G, C)
    """
    N, C, H, W = x_nchw.shape
    G, _, Cm = w1.shape
    GCm = G * Cm
    HW = H * W
    act_dtype = x_nchw.dtype
    itemsize = jnp.dtype(act_dtype).itemsize

    # ---- fuse the G branches into one wide weight pair (cheap host-side prep) ----
    # h[g*Cm+m, p] = sum_c w1[g, c, m] * x[c, p]   ->  W1cat^T[g*Cm+m, c] = w1[g, c, m]
    w1t = jnp.transpose(w1, (0, 2, 1)).reshape(GCm, C).astype(act_dtype)
    # y[c, p] = sum_{g,m} w2[g, m, c] * h[g*Cm+m, p] -> W2cat^T[c, g*Cm+m] = w2[g, m, c]
    w2t = jnp.transpose(w2.reshape(GCm, C), (1, 0)).astype(act_dtype)
    b1c = b1.reshape(GCm, 1).astype(jnp.float32)
    b2s = jnp.sum(b2.astype(jnp.float32), axis=0).reshape(C, 1)

    # ---- NCHW kept: free reshape so H*W is the 128-lane axis ----
    x3 = x_nchw.reshape(N, C, HW)

    # ---- VMEM-budget-aware spatial tile (no host-side pad; ragged last tile OK) ----
    weight_bytes = 2 * GCm * C * itemsize + (GCm + C) * 4      # single-buffered slabs
    if tile_hw is None:
        budget = min(_vmem_capacity_bytes() // 3, 20 << 20)
        # per lane-column bytes: in+out slabs double-buffered + f32 intermediates (h, y, x_f32)
        per_col = 4 * C * itemsize + (GCm + 2 * C) * 4
        tile_hw = max((budget - weight_bytes) // per_col, 128)
    if tile_hw >= HW:
        tile_hw = HW                                           # whole image per step
    else:
        tile_hw = max((tile_hw // 128) * 128, 128)             # lane-dense 128-multiples
    hw_tiles = pl.cdiv(HW, tile_hw)

    # Scoped-VMEM limit from the actual block sizes, with headroom.
    vmem_need = (4 * C * tile_hw * itemsize                    # x/out slabs, double-buffered
                 + weight_bytes                                # weights + biases, single-buffered
                 + (GCm + 2 * C) * tile_hw * 4)                # f32 intermediates in the body
    vmem_limit = int(min(_vmem_capacity_bytes(),
                         max(vmem_need + (8 << 20), 32 << 20)))

    cost = pl.CostEstimate(
        flops=4 * N * HW * C * GCm,                            # two wide matmuls
        transcendentals=0,
        bytes_accessed=2 * N * C * HW * itemsize + weight_bytes,
    )

    out3 = pl.pallas_call(
        _resnext_fused_kernel,
        out_shape=jax.ShapeDtypeStruct((N, C, HW), act_dtype),
        grid_spec=pltpu.PrefetchScalarGridSpec(
            num_scalar_prefetch=0,
            grid=(N, hw_tiles),
            in_specs=[
                pl.BlockSpec((None, C, tile_hw), lambda n, j: (n, 0, j)),      # x slab
                pl.BlockSpec((GCm, C), lambda n, j: (0, 0),
                             pipeline_mode=pl.Buffered(1)),                    # W1cat^T
                pl.BlockSpec((GCm, 1), lambda n, j: (0, 0),
                             pipeline_mode=pl.Buffered(1)),                    # b1cat
                pl.BlockSpec((C, GCm), lambda n, j: (0, 0),
                             pipeline_mode=pl.Buffered(1)),                    # W2cat^T
                pl.BlockSpec((C, 1), lambda n, j: (0, 0),
                             pipeline_mode=pl.Buffered(1)),                    # sum_g b2
            ],
            out_specs=pl.BlockSpec((None, C, tile_hw), lambda n, j: (n, 0, j)),
        ),
        compiler_params=pltpu.CompilerParams(
            dimension_semantics=("parallel", "parallel"),
            vmem_limit_bytes=vmem_limit),
        cost_estimate=cost,
    )(x3, w1t, b1c, w2t, b2s)

    return out3.reshape(N, C, H, W)


def _reference(x_nchw, w1, b1, w2, b2):
    """Pure-JAX reference of the same forward pass (per-branch loop, like PyTorch)."""
    N, C, H, W = x_nchw.shape
    G, _, Cm = w1.shape
    x2d = jnp.transpose(x_nchw, (0, 2, 3, 1)).reshape(-1, C)
    acc = x2d.astype(jnp.float32)
    for g in range(G):
        h = jnp.maximum(x2d @ w1[g] + b1[g], 0.0)
        acc = acc + (h @ w2[g] + b2[g])
    return jnp.transpose(acc.reshape(N, H, W, C), (0, 3, 1, 2)).astype(x_nchw.dtype)


if __name__ == "__main__":
    # Small, forward-consistent shapes (NCHW input).
    N, C, H, W = 2, 4, 16, 16
    G, Cm = 3, 8                       # cardinality, bottleneck width

    key = jax.random.PRNGKey(0)
    kx, k1, k2, k3, k4 = jax.random.split(key, 5)

    x = jax.random.normal(kx, (N, C, H, W), dtype=jnp.float32)
    # Deterministic, roughly kaiming-scaled parameter init.
    w1 = jax.random.normal(k1, (G, C, Cm), dtype=jnp.float32) * (2.0 / C) ** 0.5
    b1 = jax.random.normal(k2, (G, Cm), dtype=jnp.float32) * 0.01
    w2 = jax.random.normal(k3, (G, Cm, C), dtype=jnp.float32) * (2.0 / Cm) ** 0.5
    b2 = jax.random.normal(k4, (G, C), dtype=jnp.float32) * 0.01

    y = resnext_block(x, w1, b1, w2, b2)
    y = jax.block_until_ready(y)

    y_ref = _reference(x, w1, b1, w2, b2)
    np.testing.assert_allclose(np.asarray(y), np.asarray(y_ref), rtol=1e-5, atol=1e-5)

    print("KERNEL_OK")
</pallas_src>

<mosaic_0001>
module attributes {stable_mosaic.version = 11 : i64} {
  func.func @_resnext_fused_kernel(%arg0: i32, %arg1: i32, %arg2: memref<1x4x256xf32, #tpu.memory_space<vmem>>, %arg3: memref<24x4xf32, #tpu.memory_space<vmem>>, %arg4: memref<24x1xf32, #tpu.memory_space<vmem>>, %arg5: memref<4x24xf32, #tpu.memory_space<vmem>>, %arg6: memref<4x1xf32, #tpu.memory_space<vmem>>, %arg7: memref<1x4x256xf32, #tpu.memory_space<vmem>>) attributes {dimension_semantics = [#tpu.dimension_semantics<parallel>, #tpu.dimension_semantics<parallel>], iteration_bounds = array<i64: 2, 1>, scalar_prefetch = 0 : i64, scratch_operands = 0 : i64, tpu.core_type = #tpu.core_type<tc>, window_params = [{transform_indices = @transform_0, window_bounds = array<i64: 1, 4, 256>}, {pipeline_mode = #tpu.pipeline_mode<synchronous>, transform_indices = @transform_1, window_bounds = array<i64: 24, 4>}, {pipeline_mode = #tpu.pipeline_mode<synchronous>, transform_indices = @transform_2, window_bounds = array<i64: 24, 1>}, {pipeline_mode = #tpu.pipeline_mode<synchronous>, transform_indices = @transform_3, window_bounds = array<i64: 4, 24>}, {pipeline_mode = #tpu.pipeline_mode<synchronous>, transform_indices = @transform_4, window_bounds = array<i64: 4, 1>}, {transform_indices = @transform_5, window_bounds = array<i64: 1, 4, 256>}]} {
    %c0 = arith.constant 0 : index
    %c0_0 = arith.constant 0 : index
    %c0_1 = arith.constant 0 : index
    %0 = vector.load %arg2[%c0, %c0_0, %c0_1] : memref<1x4x256xf32, #tpu.memory_space<vmem>>, vector<1x4x256xf32>
    %1 = vector.shape_cast %0 : vector<1x4x256xf32> to vector<4x256xf32>
    %c0_2 = arith.constant 0 : index
    %c0_3 = arith.constant 0 : index
    %2 = vector.load %arg3[%c0_2, %c0_3] : memref<24x4xf32, #tpu.memory_space<vmem>>, vector<24x4xf32>
    %cst = arith.constant dense<0.000000e+00> : vector<24x256xf32>
    %3 = tpu.matmul %2, %1, %cst {dimension_numbers = #tpu.dot_dimension_numbers<[1], [0], [0], [1], [0, 0, 1, 1], [], []>} : vector<24x4xf32>, vector<4x256xf32>, vector<24x256xf32> -> vector<24x256xf32>
    %c0_4 = arith.constant 0 : index
    %c0_5 = arith.constant 0 : index
    %4 = vector.load %arg4[%c0_4, %c0_5] : memref<24x1xf32, #tpu.memory_space<vmem>>, vector<24x1xf32>
    %5 = vector.broadcast %4 : vector<24x1xf32> to vector<24x256xf32>
    %6 = arith.addf %3, %5 : vector<24x256xf32>
    %cst_6 = arith.constant 0.000000e+00 : f32
    %7 = vector.broadcast %cst_6 : f32 to vector<24x256xf32>
    %8 = arith.maximumf %6, %7 : vector<24x256xf32>
    %c0_7 = arith.constant 0 : index
    %c0_8 = arith.constant 0 : index
    %9 = vector.load %arg5[%c0_7, %c0_8] : memref<4x24xf32, #tpu.memory_space<vmem>>, vector<4x24xf32>
    %cst_9 = arith.constant dense<0.000000e+00> : vector<4x256xf32>
    %10 = tpu.matmul %9, %8, %cst_9 {dimension_numbers = #tpu.dot_dimension_numbers<[1], [0], [0], [1], [0, 0, 1, 1], [], []>} : vector<4x24xf32>, vector<24x256xf32>, vector<4x256xf32> -> vector<4x256xf32>
    %c0_10 = arith.constant 0 : index
    %c0_11 = arith.constant 0 : index
    %11 = vector.load %arg6[%c0_10, %c0_11] : memref<4x1xf32, #tpu.memory_space<vmem>>, vector<4x1xf32>
    %12 = vector.broadcast %11 : vector<4x1xf32> to vector<4x256xf32>
    %13 = arith.addf %10, %12 : vector<4x256xf32>
    %14 = arith.addf %13, %1 : vector<4x256xf32>
    %c0_12 = arith.constant 0 : index
    %c0_13 = arith.constant 0 : index
    %c0_14 = arith.constant 0 : index
    %15 = vector.load %arg7[%c0_12, %c0_13, %c0_14] : memref<1x4x256xf32, #tpu.memory_space<vmem>>, vector<1x4x256xf32>
    %16 = vector.shape_cast %15 : vector<1x4x256xf32> to vector<4x256xf32>
    %17 = vector.shape_cast %14 : vector<4x256xf32> to vector<1x4x256xf32>
    tpu.vector_store %arg7[%c0_12, %c0_13, %c0_14], %17 {strides = array<i32>} : memref<1x4x256xf32, #tpu.memory_space<vmem>>, vector<1x4x256xf32>,
    return
  }
  func.func @transform_0(%arg0: i32, %arg1: i32) -> (i32, i32, i32) {
    %c0_i32 = arith.constant 0 : i32
    %c0_i32_0 = arith.constant 0 : i32
    return %arg0, %c0_i32, %arg1 : i32, i32, i32
  }
  func.func @transform_1(%arg0: i32, %arg1: i32) -> (i32, i32) {
    %c0_i32 = arith.constant 0 : i32
    %c0_i32_0 = arith.constant 0 : i32
    %c0_i32_1 = arith.constant 0 : i32
    return %c0_i32, %c0_i32_0 : i32, i32
  }
  func.func @transform_2(%arg0: i32, %arg1: i32) -> (i32, i32) {
    %c0_i32 = arith.constant 0 : i32
    %c0_i32_0 = arith.constant 0 : i32
    %c0_i32_1 = arith.constant 0 : i32
    return %c0_i32, %c0_i32_0 : i32, i32
  }
  func.func @transform_3(%arg0: i32, %arg1: i32) -> (i32, i32) {
    %c0_i32 = arith.constant 0 : i32
    %c0_i32_0 = arith.constant 0 : i32
    %c0_i32_1 = arith.constant 0 : i32
    return %c0_i32, %c0_i32_0 : i32, i32
  }
  func.func @transform_4(%arg0: i32, %arg1: i32) -> (i32, i32) {
    %c0_i32 = arith.constant 0 : i32
    %c0_i32_0 = arith.constant 0 : i32
    %c0_i32_1 = arith.constant 0 : i32
    return %c0_i32, %c0_i32_0 : i32, i32
  }
  func.func @transform_5(%arg0: i32, %arg1: i32) -> (i32, i32, i32) {
    %c0_i32 = arith.constant 0 : i32
    %c0_i32_0 = arith.constant 0 : i32
    return %arg0, %c0_i32, %arg1 : i32, i32, i32
  }
}

</mosaic_0001>

<llo_original>
// kernel: tpu_custom_call.1
$region0: #{tpu_custom_call.1}
  #allocation0 [shape = 'u32[]', space=smem, size = 0x4, offset = 0x4, fixed_abs, tag = 'smem constant byte address 0x4 - core index']
  #allocation1 [shape = 'u32[144,128]{1,0:T(1,128)}', space=vmem, size = 0x12000, scoped, tag = 'internal scratch']
  %s0 = inlined_call_operand.vmem [shape: f32[2,4,256], index: 0, kind: input, shape index: {}]
  %s1 = inlined_call_operand.vmem [shape: f32[24,4], index: 1, kind: input, shape index: {}]
  %s2 = inlined_call_operand.vmem [shape: f32[24,1], index: 2, kind: input, shape index: {}]
  %s3 = inlined_call_operand.vmem [shape: f32[4,24], index: 3, kind: input, shape index: {}]
  %s4 = inlined_call_operand.vmem [shape: f32[4,1], index: 4, kind: input, shape index: {}]
  %s5 = inlined_call_operand.hbm [shape: f32[2,4,256], index: 5, kind: output, shape index: {}]
  %s6 = sld [smem:[#allocation0]]
  $region53: #{tpu_custom_call.1} parent=0
    _
  %s8 = ssub.s32 1, %s6
  %s9 = scalar_select 0, %s8, %s6
  $region1: #{tpu_custom_call.1} parent=0
    #allocation2 [shape = 'u8[8192]{0}', space=vmem, size = 0x2000, scoped, tag = 'output window, operand 0']
    #allocation3 [shape = 's32[2]{0}', space=sflag, size = 0x8, scoped, tag = 'scoped memory for tpu_custom_call.1']
    %10 = vsyncpa [#allocation3], 0
    %s11 = scalar_lea.sflag [#allocation3], 1
    %12 = vsyncpa %s11, 0
    loop: start=0, step=1, limit=4
    $region2: #{tpu_custom_call.1} parent=1 // loop_pre_header
      _
    $region3: #{tpu_custom_call.1} parent=1 // loop_header
      %s14 = sphi 0, %s18
      %p15 = scmp.ge.s32.totalorder %s14, 4
      %s21 = sphi 0, %s33
      %s22 = sphi 0, %s29
      %s23 = sphi 0, %s21
      %s24 = sphi 0, %s22
      %s25 = sphi 0, %s23
      %s26 = sphi 0, %s24
      %s38 = sphi 0, %s40
      %s41 = sphi 0, %s38
      %s42 = sphi 0, %s41
      %s58 = sphi 0, %s42
      %s62 = sphi 0, %s62
      %s64 = sphi 0, %s62
      %s65 = sphi 0, %s64
      %s79 = sphi 0, %s65
      %s83 = sphi 0, %s83
      %s85 = sphi 0, %s83
      %s86 = sphi 0, %s85
      %s100 = sphi 0, %s86
      %s104 = sphi 0, %s104
      %s106 = sphi 0, %s104
      %s107 = sphi 0, %s106
      %s121 = sphi 0, %s107
      %s125 = sphi 0, %s125
      %s127 = sphi 0, %s125
      %s128 = sphi 0, %s127
      %s142 = sphi 0, %s128
      %s150 = sphi 0, %s152
      %s153 = sphi 0, %s150
      %s154 = sphi 0, %s153
      %s170 = sphi 0, %s154
    $region4: #{tpu_custom_call.1} parent=1 // loop_header_branch
      %17 = sbr.rel (%p15) target = $region8
    $region5: #{tpu_custom_call.1} parent=1 // loop_body
      %s19 = ssub.s32 %s14, 1
      %s20 = ssub.s32 %s14, 2
      %s27 = sadd.s32 1, %s22
      %p28 = scmp.ge.s32.totalorder %s27, 1
      %s29 = scalar_select %p28, 0, %s27
      %s30 = sadd.s32 1, %s21
      %s31 = scalar_select %p28, %s30, %s21
      %p32 = scmp.ge.s32.totalorder %s31, 2
      %s33 = scalar_select %p32, 0, %s31
      %s34 = ssub.s32 %s21, %s33
      %s35 = ssub.s32 %s22, %s29
      %s36 = sor.u32 %s34, %s35
      %p37 = scmp.eq.s32.totalorder %s36, 0
      %s39 = sadd.s32 %s38, 1
      %s40 = scalar_select %p37, %s38, %s39
      %p43 = pneg %p37
      %p44 = scmp.eq.s32.totalorder %s14, 1
      %p45 = por %p43, %p44
      %p46 = scmp.ne.s32.totalorder %s38, %s41
      %p47 = scmp.eq.s32.totalorder %s14, 0
      %p48 = por %p46, %p47
      %p49 = scmp.ne.s32.totalorder %s38, %s41
      %p50 = scmp.eq.s32.totalorder %s19, 1
      %p51 = por %p49, %p50
      %p52 = scmp.ne.s32.totalorder %s41, %s42
      %p53 = scmp.eq.s32.totalorder %s19, 0
      %p54 = por %p52, %p53
      %p55 = scmp.ne.s32.totalorder %s41, %s42
      %p56 = scmp.eq.s32.totalorder %s20, 1
      %p57 = por %p55, %p56
      %p59 = scmp.ne.s32.totalorder %s42, %s58
      %p60 = scmp.eq.s32.totalorder %s20, 0
      %p61 = por %p59, %p60
      %s63 = sadd.s32 %s62, 1
      %p66 = scmp.eq.s32.totalorder %s14, 1
      %p67 = scmp.ne.s32.totalorder %s62, %s64
      %p68 = scmp.eq.s32.totalorder %s14, 0
      %p69 = por %p67, %p68
      %p70 = scmp.ne.s32.totalorder %s62, %s64
      %p71 = scmp.eq.s32.totalorder %s19, 1
      %p72 = por %p70, %p71
      %p73 = scmp.ne.s32.totalorder %s64, %s65
      %p74 = scmp.eq.s32.totalorder %s19, 0
      %p75 = por %p73, %p74
      %p76 = scmp.ne.s32.totalorder %s64, %s65
      %p77 = scmp.eq.s32.totalorder %s20, 1
      %p78 = por %p76, %p77
      %p80 = scmp.ne.s32.totalorder %s65, %s79
      %p81 = scmp.eq.s32.totalorder %s20, 0
      %p82 = por %p80, %p81
      %s84 = sadd.s32 %s83, 1
      %p87 = scmp.eq.s32.totalorder %s14, 1
      %p88 = scmp.ne.s32.totalorder %s83, %s85
      %p89 = scmp.eq.s32.totalorder %s14, 0
      %p90 = por %p88, %p89
      %p91 = scmp.ne.s32.totalorder %s83, %s85
      %p92 = scmp.eq.s32.totalorder %s19, 1
      %p93 = por %p91, %p92
      %p94 = scmp.ne.s32.totalorder %s85, %s86
      %p95 = scmp.eq.s32.totalorder %s19, 0
      %p96 = por %p94, %p95
      %p97 = scmp.ne.s32.totalorder %s85, %s86
      %p98 = scmp.eq.s32.totalorder %s20, 1
      %p99 = por %p97, %p98
      %p101 = scmp.ne.s32.totalorder %s86, %s100
      %p102 = scmp.eq.s32.totalorder %s20, 0
      %p103 = por %p101, %p102
      %s105 = sadd.s32 %s104, 1
      %p108 = scmp.eq.s32.totalorder %s14, 1
      %p109 = scmp.ne.s32.totalorder %s104, %s106
      %p110 = scmp.eq.s32.totalorder %s14, 0
      %p111 = por %p109, %p110
      %p112 = scmp.ne.s32.totalorder %s104, %s106
      %p113 = scmp.eq.s32.totalorder %s19, 1
      %p114 = por %p112, %p113
      %p115 = scmp.ne.s32.totalorder %s106, %s107
      %p116 = scmp.eq.s32.totalorder %s19, 0
      %p117 = por %p115, %p116
      %p118 = scmp.ne.s32.totalorder %s106, %s107
      %p119 = scmp.eq.s32.totalorder %s20, 1
      %p120 = por %p118, %p119
      %p122 = scmp.ne.s32.totalorder %s107, %s121
      %p123 = scmp.eq.s32.totalorder %s20, 0
      %p124 = por %p122, %p123
      %s126 = sadd.s32 %s125, 1
      %p129 = scmp.eq.s32.totalorder %s14, 1
      %p130 = scmp.ne.s32.totalorder %s125, %s127
      %p131 = scmp.eq.s32.totalorder %s14, 0
      %p132 = por %p130, %p131
      %p133 = scmp.ne.s32.totalorder %s125, %s127
      %p134 = scmp.eq.s32.totalorder %s19, 1
      %p135 = por %p133, %p134
      %p136 = scmp.ne.s32.totalorder %s127, %s128
      %p137 = scmp.eq.s32.totalorder %s19, 0
      %p138 = por %p136, %p137
      %p139 = scmp.ne.s32.totalorder %s127, %s128
      %p140 = scmp.eq.s32.totalorder %s20, 1
      %p141 = por %p139, %p140
      %p143 = scmp.ne.s32.totalorder %s128, %s142
      %p144 = scmp.eq.s32.totalorder %s20, 0
      %p145 = por %p143, %p144
      %s146 = ssub.s32 %s21, %s33
      %s147 = ssub.s32 %s22, %s29
      %s148 = sor.u32 %s146, %s147
      %p149 = scmp.eq.s32.totalorder %s148, 0
      %s151 = sadd.s32 %s150, 1
      %s152 = scalar_select %p149, %s150, %s151
      %p155 = pneg %p149
      %p156 = scmp.eq.s32.totalorder %s14, 1
      %p157 = por %p155, %p156
      %p158 = scmp.ne.s32.totalorder %s150, %s153
      %p159 = scmp.eq.s32.totalorder %s14, 0
      %p160 = por %p158, %p159
      %p161 = scmp.ne.s32.totalorder %s150, %s153
      %p162 = scmp.eq.s32.totalorder %s19, 1
      %p163 = por %p161, %p162
      %p164 = scmp.ne.s32.totalorder %s153, %s154
      %p165 = scmp.eq.s32.totalorder %s19, 0
      %p166 = por %p164, %p165
      %p167 = scmp.ne.s32.totalorder %s153, %s154
      %p168 = scmp.eq.s32.totalorder %s20, 1
      %p169 = por %p167, %p168
      %p171 = scmp.ne.s32.totalorder %s154, %s170
      %p172 = scmp.eq.s32.totalorder %s20, 0
      %p173 = por %p171, %p172
      %p174 = scmp.le.s32.totalorder 1, %s14
      %p175 = scmp.lt.s32.totalorder %s14, 3
      %p176 = pnand %p174, %p175
      %p177 = pneg %p176
      // Predicated region
      $region9: #{tpu_custom_call.1} parent=5 // pred_check
        _
      $region10: #{tpu_custom_call.1} parent=5 // pred_check_branch
        %179 = sbr.rel (%p176) target = $region12
      $region11: #{tpu_custom_call.1} parent=5 // pred_region
        %s180 = ssub.s32 %s14, 1
        // Predicated region
        $region13: #{tpu_custom_call.1} parent=11 // pred_check
          %p181 = pneg %p75
        $region14: #{tpu_custom_call.1} parent=11 // pred_check_branch
          %183 = sbr.rel (%p181) target = $region16
        $region15: #{tpu_custom_call.1} parent=11 // pred_region
          _
        $region16: #{tpu_custom_call.1} parent=11 // pred_fallthru
          _
        // Predicated region
        $region17: #{tpu_custom_call.1} parent=11 // pred_check
          %p184 = pneg %p96
        $region18: #{tpu_custom_call.1} parent=11 // pred_check_branch
          %186 = sbr.rel (%p184) target = $region20
        $region19: #{tpu_custom_call.1} parent=11 // pred_region
          _
        $region20: #{tpu_custom_call.1} parent=11 // pred_fallthru
          _
        // Predicated region
        $region21: #{tpu_custom_call.1} parent=11 // pred_check
          %p187 = pneg %p117
        $region22: #{tpu_custom_call.1} parent=11 // pred_check_branch
          %189 = sbr.rel (%p187) target = $region24
        $region23: #{tpu_custom_call.1} parent=11 // pred_region
          _
        $region24: #{tpu_custom_call.1} parent=11 // pred_fallthru
          _
        // Predicated region
        $region25: #{tpu_custom_call.1} parent=11 // pred_check
          %p190 = pneg %p138
        $region26: #{tpu_custom_call.1} parent=11 // pred_check_branch
          %192 = sbr.rel (%p190) target = $region28
        $region27: #{tpu_custom_call.1} parent=11 // pred_region
          _
        $region28: #{tpu_custom_call.1} parent=11 // pred_fallthru
          _
      $region12: #{tpu_custom_call.1} parent=5 // pred_fallthru
        _
      %p193 = scmp.lt.s32.totalorder %s14, 2
      // Predicated region
      $region29: #{tpu_custom_call.1} parent=5 // pred_check
        %p194 = pneg %p193
      $region30: #{tpu_custom_call.1} parent=5 // pred_check_branch
        %196 = sbr.rel (%p194) target = $region32
      $region31: #{tpu_custom_call.1} parent=5 // pred_region
        // Predicated region
        $region33: #{tpu_custom_call.1} parent=31 // pred_check
          %p197 = pneg %p48
        $region34: #{tpu_custom_call.1} parent=31 // pred_check_branch
          %199 = sbr.rel (%p197) target = $region36
        $region35: #{tpu_custom_call.1} parent=31 // pred_region
          %s200 = smul.u32 2, %s22
          %p201 = scmp.lt.s32.totalorder %s21, 1
          %s202 = scalar_select %p201, %s21, 1
          %p203 = scmp.lt.s32.totalorder %s200, 1
          %s204 = scalar_select %p203, %s200, 1
          %s205 = smul.addr %s202, 2
          %s206 = sadd.s32 %s204, %s205
          %s207 = smul.addr %s206, 4
          %s208 = scalar_lea.vmem %s0, %s207
          %s209 = smul.u32 2, %s22
        $region36: #{tpu_custom_call.1} parent=31 // pred_fallthru
          _
      $region32: #{tpu_custom_call.1} parent=5 // pred_fallthru
        _
      %p210 = scmp.le.s32.totalorder 1, %s14
      %p211 = scmp.lt.s32.totalorder %s14, 3
      %p212 = pnand %p210, %p211
      %p213 = pneg %p212
      // Predicated region
      $region37: #{tpu_custom_call.1} parent=5 // pred_check
        _
      $region38: #{tpu_custom_call.1} parent=5 // pred_check_branch
        %215 = sbr.rel (%p212) target = $region40
      $region39: #{tpu_custom_call.1} parent=5 // pred_region
        %s216 = ssub.s32 %s14, 1
        %s217 = smul.u32 2, %s24
        %p218 = scmp.lt.s32.totalorder %s23, 1
        %s219 = scalar_select %p218, %s23, 1
        %p220 = scmp.lt.s32.totalorder %s217, 1
        %s221 = scalar_select %p220, %s217, 1
        %s222 = smul.addr %s219, 2
        %s223 = sadd.s32 %s221, %s222
        %s224 = smul.addr %s223, 4
        %s225 = scalar_lea.vmem %s0, %s224
        %p226 = pneg %p54
        %p227 = pneg %p51
        %p228 = pneg %p75
        %p229 = pneg %p72
        %p230 = pneg %p96
        %p231 = pneg %p93
        %p232 = pneg %p117
        %p233 = pneg %p114
        %p234 = pneg %p138
        %p235 = pneg %p135
        %p236 = pneg %p166
        %p237 = pneg %p163
        %s238 = sand.u32 %s153, 1
        %s239 = scalar_lea.sflag [#allocation3], %s238
        %s240 = sand.u32 %s153, 1
        %s241 = smul.addr %s240, 8
        %s242 = scalar_lea.vmem [#allocation2], %s241
        %s243 = smul.u32 2, %s24
        %p244 = scmp.lt.s32.totalorder %s23, 1
        %s245 = scalar_select %p244, %s23, 1
        %p246 = scmp.lt.s32.totalorder %s243, 1
        %s247 = scalar_select %p246, %s243, 1
        %s248 = smul.addr %s245, 2
        %s249 = sadd.s32 %s247, %s248
        %s250 = smul.addr %s249, 4
        %s251 = scalar_lea.vmem %s0, %s250
        %s252 = smul.u32 2, %s24
        %s253 = smul.u32 2, %s24
        %v254 = vld [vmem:[%s251] sm:$0xff]
        %v255 = vld [vmem:[%s1] sm:$0xff]
        %v256 = vld [vmem:[%s1 + $0x8] sm:$0xff]
        %v257 = vld [vmem:[%s1 + $0x10] sm:$0xff]
        %v258 = vld [vmem:[%s2] sm:$0xff]
        %v259 = vld [vmem:[%s2 + $0x8] sm:$0xff]
        %v260 = vld [vmem:[%s2 + $0x10] sm:$0xff]
        %262 = vset.pattern.permute.xlu0 0
        %263 = vperm.xlu0 %262, %v258
        %v264 = vpop.permute.xlu0 %263
        %267 = vset.pattern.permute.xlu0 0
        %268 = vperm.xlu0 %267, %v259
        %v269 = vpop.permute.xlu0 %268
        %272 = vset.pattern.permute.xlu0 0
        %273 = vperm.xlu0 %272, %v260
        %v274 = vpop.permute.xlu0 %273
        %v277 = vcombine.high %v254, %v254
        %vm278 = vcmask 31744
        %v280 = vsel %vm278, %v255, 0
        %v283 = vsel %vm278, %v256, 0
        %v286 = vsel %vm278, %v257, 0
        %vm288 = vcmask 1043456
        %v289 = vsel %vm288, %v254, 0
        %v291 = vsel %vm288, %v277, 0
        %293 = vmatprep.subr.mxu0 %v291
        %294 = vmatpush1.msra.mxu0 %v289
        %295 = vmatprep.subr.mxu0 0.0
        %296 = vmatpush1.msra.mxu0 0.0
        %297 = vmatprep.subr.mxu0 0.0
        %298 = vmatpush1.msra.mxu0 0.0
        %299 = vmatprep.subr.mxu0 0.0
        %300 = vmatpush1.msra.mxu0 0.0
        %301 = vmatprep.subr.mxu0 0.0
        %302 = vmatpush1.msra.mxu0 0.0
        %303 = vmatprep.subr.mxu0 0.0
        %304 = vmatpush1.msra.mxu0 0.0
        %305 = vmatprep.subr.mxu0 0.0
        %306 = vmatpush1.msra.mxu0 0.0
        %307 = vmatprep.subr.mxu0 0.0
        %308 = vmatpush1.msra.mxu0 0.0
        %309 = vmatprep.subr.mxu0 0.0
        %310 = vmatpush1.msra.mxu0 0.0
        %311 = vmatprep.subr.mxu0 0.0
        %312 = vmatpush1.msra.mxu0 0.0
        %313 = vmatprep.subr.mxu0 0.0
        %314 = vmatpush1.msra.mxu0 0.0
        %315 = vmatprep.subr.mxu0 0.0
        %316 = vmatpush1.msra.mxu0 0.0
        %317 = vmatprep.subr.mxu0 0.0
        %318 = vmatpush1.msra.mxu0 0.0
        %319 = vmatprep.subr.mxu0 0.0
        %320 = vmatpush1.msra.mxu0 0.0
        %321 = vmatprep.subr.mxu0 0.0
        %322 = vmatpush1.msra.mxu0 0.0
        %323 = vmatprep.subr.mxu0 0.0
        %324 = vmatpush1.msra.mxu0 0.0
        %325 = vmatprep.subr.mxu0 0.0
        %326 = vmatpush1.msra.mxu0 0.0
        %327 = vmatprep.subr.mxu0 0.0
        %328 = vmatpush1.msra.mxu0 0.0
        %329 = vmatprep.subr.mxu0 0.0
        %330 = vmatpush1.msra.mxu0 0.0
        %331 = vmatprep.subr.mxu0 0.0
        %332 = vmatpush1.msra.mxu0 0.0
        %333 = vmatprep.subr.mxu0 0.0
        %334 = vmatpush1.msra.mxu0 0.0
        %335 = vmatprep.subr.mxu0 0.0
        %336 = vmatpush1.msra.mxu0 0.0
        %337 = vmatprep.subr.mxu0 0.0
        %338 = vmatpush1.msra.mxu0 0.0
        %339 = vmatprep.subr.mxu0 0.0
        %340 = vmatpush1.msra.mxu0 0.0
        %341 = vmatprep.subr.mxu0 0.0
        %342 = vmatpush1.msra.mxu0 0.0
        %343 = vmatprep.subr.mxu0 0.0
        %344 = vmatpush1.msra.mxu0 0.0
        %345 = vmatprep.subr.mxu0 0.0
        %346 = vmatpush1.msra.mxu0 0.0
        %347 = vmatprep.subr.mxu0 0.0
        %348 = vmatpush1.msra.mxu0 0.0
        %349 = vmatprep.subr.mxu0 0.0
        %350 = vmatpush1.msra.mxu0 0.0
        %351 = vmatprep.subr.mxu0 0.0
        %352 = vmatpush1.msra.mxu0 0.0
        %353 = vmatprep.subr.mxu0 0.0
        %354 = vmatpush1.msra.mxu0 0.0
        %355 = vmatprep.subr.mxu0 0.0
        %356 = vmatpush1.msra.mxu0 0.0
        %357 = vmatprep.mubr.f32.mxu0 0.0
        %358 = vmatmul.mubr.f32.gmra.mrb[0].mxu0 %v280
        %v359 = vpop.f32.mrb[0].mxu0
        %v360 = vadd.f32 %v264, %v359
        %v361 = vpop.f32.mrb[0].mxu0
        %v362 = vadd.f32 %v264, %v361
        %363 = vmatprep.mubr.f32.mxu0 0.0
        %364 = vmatmul.mubr.f32.gmra.mrb[0].mxu0 %v283
        %v365 = vpop.f32.mrb[0].mxu0
        %v366 = vadd.f32 %v269, %v365
        %v367 = vpop.f32.mrb[0].mxu0
        %v368 = vadd.f32 %v269, %v367
        %369 = vmatprep.mubr.f32.mxu0 0.0
        %370 = vmatmul.mubr.f32.gmra.mrb[0].mxu0 %v286
        %v371 = vpop.f32.mrb[0].mxu0
        %v372 = vadd.f32 %v274, %v371
        %v373 = vpop.f32.mrb[0].mxu0
        %v374 = vadd.f32 %v274, %v373
        %375 = vdwg.mxu0
        %v376 = vmax.f32 %v360, 0.0
        %v377 = vmax.f32 %v362, 0.0
        %v378 = vmax.f32 %v366, 0.0
        %v379 = vmax.f32 %v368, 0.0
        %v380 = vmax.f32 %v372, 0.0
        %v381 = vmax.f32 %v374, 0.0
        %v382 = vld [vmem:[%s3] sm:$0xf]
        %v383 = vld [vmem:[%s4] sm:$0xf]
        %385 = vset.pattern.permute.xlu0 0
        %386 = vperm.xlu0 %385, %v383
        %v387 = vpop.permute.xlu0 %386
        %vm389 = vcmask 195584
        %v391 = vsel %vm389, %v382, 0
        %393 = vmatprep.subr.mxu0 %v377
        %394 = vmatpush1.msra.mxu0 %v376
        %395 = vmatprep.subr.mxu0 %v379
        %396 = vmatpush1.msra.mxu0 %v378
        %397 = vmatprep.subr.mxu0 %v381
        %398 = vmatpush1.msra.mxu0 %v380
        %399 = vmatprep.subr.mxu0 0.0
        %400 = vmatpush1.msra.mxu0 0.0
        %401 = vmatprep.subr.mxu0 0.0
        %402 = vmatpush1.msra.mxu0 0.0
        %403 = vmatprep.subr.mxu0 0.0
        %404 = vmatpush1.msra.mxu0 0.0
        %405 = vmatprep.subr.mxu0 0.0
        %406 = vmatpush1.msra.mxu0 0.0
        %407 = vmatprep.subr.mxu0 0.0
        %408 = vmatpush1.msra.mxu0 0.0
        %409 = vmatprep.subr.mxu0 0.0
        %410 = vmatpush1.msra.mxu0 0.0
        %411 = vmatprep.subr.mxu0 0.0
        %412 = vmatpush1.msra.mxu0 0.0
        %413 = vmatprep.subr.mxu0 0.0
        %414 = vmatpush1.msra.mxu0 0.0
        %415 = vmatprep.subr.mxu0 0.0
        %416 = vmatpush1.msra.mxu0 0.0
        %417 = vmatprep.subr.mxu0 0.0
        %418 = vmatpush1.msra.mxu0 0.0
        %419 = vmatprep.subr.mxu0 0.0
        %420 = vmatpush1.msra.mxu0 0.0
        %421 = vmatprep.subr.mxu0 0.0
        %422 = vmatpush1.msra.mxu0 0.0
        %423 = vmatprep.subr.mxu0 0.0
        %424 = vmatpush1.msra.mxu0 0.0
        %425 = vmatprep.subr.mxu0 0.0
        %426 = vmatpush1.msra.mxu0 0.0
        %427 = vmatprep.subr.mxu0 0.0
        %428 = vmatpush1.msra.mxu0 0.0
        %429 = vmatprep.subr.mxu0 0.0
        %430 = vmatpush1.msra.mxu0 0.0
        %431 = vmatprep.subr.mxu0 0.0
        %432 = vmatpush1.msra.mxu0 0.0
        %433 = vmatprep.subr.mxu0 0.0
        %434 = vmatpush1.msra.mxu0 0.0
        %435 = vmatprep.subr.mxu0 0.0
        %436 = vmatpush1.msra.mxu0 0.0
        %437 = vmatprep.subr.mxu0 0.0
        %438 = vmatpush1.msra.mxu0 0.0
        %439 = vmatprep.subr.mxu0 0.0
        %440 = vmatpush1.msra.mxu0 0.0
        %441 = vmatprep.subr.mxu0 0.0
        %442 = vmatpush1.msra.mxu0 0.0
        %443 = vmatprep.subr.mxu0 0.0
        %444 = vmatpush1.msra.mxu0 0.0
        %445 = vmatprep.subr.mxu0 0.0
        %446 = vmatpush1.msra.mxu0 0.0
        %447 = vmatprep.subr.mxu0 0.0
        %448 = vmatpush1.msra.mxu0 0.0
        %449 = vmatprep.subr.mxu0 0.0
        %450 = vmatpush1.msra.mxu0 0.0
        %451 = vmatprep.subr.mxu0 0.0
        %452 = vmatpush1.msra.mxu0 0.0
        %453 = vmatprep.subr.mxu0 0.0
        %454 = vmatpush1.msra.mxu0 0.0
        %455 = vmatprep.subr.mxu0 0.0
        %456 = vmatpush1.msra.mxu0 0.0
        %457 = vmatprep.mubr.f32.mxu0 0.0
        %458 = vmatmul.mubr.f32.gmra.mrb[0].mxu0 %v391
        %v459 = vpop.f32.mrb[0].mxu0
        %v460 = vadd.f32 %v387, %v459
        %v461 = vpop.f32.mrb[0].mxu0
        %v462 = vadd.f32 %v387, %v461
        %463 = vdwg.mxu0
        %v465 = vadd.f32 %v460, %v254
        %v466 = vadd.f32 %v462, %v277
        %v469 = vcombine.low %v465, %v466
        %471 = vst [vmem:[%s242] sm:$0xff] %v469
        %s472 = sand.u32 %s153, 1
        %s473 = scalar_lea.sflag [#allocation3], %s472
        %s474 = sand.u32 %s153, 1
        %s475 = smul.addr %s474, 8
        %s476 = scalar_lea.vmem [#allocation2], %s475
        // Predicated region
        $region41: #{tpu_custom_call.1} parent=39 // pred_check
          %p477 = pneg %p163
        $region42: #{tpu_custom_call.1} parent=39 // pred_check_branch
          %479 = sbr.rel (%p477) target = $region44
        $region43: #{tpu_custom_call.1} parent=39 // pred_region
          %s480 = smul.u32 2, %s24
          %s482 = ssub.s32 128, 128
          %483 = vsyncadd %s473, %s482
          %s484 = smul.addr %s23, 2
          %s485 = sadd.s32 %s480, %s484
          %s486 = smul.addr %s485, 64
          %s487 = scalar_lea.hbm %s5, %s486
          %s489 = sshll.u32 %s476, 4
          %s490 = int_to_ptr.vmem [resolvable:$true] %s489
          %492 = dma.vmem_to_hbm [thread:$0]  %s490, 128, %s487, %s473
        $region44: #{tpu_custom_call.1} parent=39 // pred_fallthru
          _
      $region40: #{tpu_custom_call.1} parent=5 // pred_fallthru
        _
      %p493 = scmp.le.s32.totalorder 2, %s14
      // Predicated region
      $region45: #{tpu_custom_call.1} parent=5 // pred_check
        %p494 = pneg %p493
      $region46: #{tpu_custom_call.1} parent=5 // pred_check_branch
        %496 = sbr.rel (%p494) target = $region48
      $region47: #{tpu_custom_call.1} parent=5 // pred_region
        %s497 = ssub.s32 %s14, 2
        // Predicated region
        $region49: #{tpu_custom_call.1} parent=47 // pred_check
          %p498 = pneg %p169
        $region50: #{tpu_custom_call.1} parent=47 // pred_check_branch
          %500 = sbr.rel (%p498) target = $region52
        $region51: #{tpu_custom_call.1} parent=47 // pred_region
          %s501 = sand.u32 %s154, 1
          %s502 = scalar_lea.sflag [#allocation3], %s501
          %s503 = sand.u32 %s154, 1
          %s504 = smul.addr %s503, 8
          %s505 = scalar_lea.vmem [#allocation2], %s504
          %506 = dma.done %s502, 128
        $region52: #{tpu_custom_call.1} parent=47 // pred_fallthru
          _
      $region48: #{tpu_custom_call.1} parent=5 // pred_fallthru
        _
    $region6: #{tpu_custom_call.1} parent=1 // loop_footer
      %s18 = sadd.s32 1, %s14
    $region7: #{tpu_custom_call.1} parent=1 // loop_footer_branch
      %13 = sbr.rel target = $region3
    $region8: #{tpu_custom_call.1} parent=1 // loop_exit
      _
    %507 = vsyncpa [#allocation3], 1
    %s508 = scalar_lea.sflag [#allocation3], 1
    %509 = vsyncpa %s508, 1

</llo_original>
